<compile_context>
chip_gen: v6e
topology: v6e:2x2x1
jax: 0.10.0
libtpu: 0.0.40
codegen_flags: <defaults>
</compile_context>

<pallas_src>
import functools

import numpy as np
import jax
import jax.numpy as jnp
from jax.experimental import pallas as pl
from jax.experimental.pallas import tpu as pltpu


# ------------------------------------------------------------------- VMEM budgeting

def _vmem_capacity_bytes():
    """Physical VMEM per TensorCore (128 MiB v5e/v6e, 64 MiB v7x); safe fallback."""
    try:
        info = pltpu.get_tpu_info()
        cap = getattr(info, "vmem_capacity_bytes", None)
        if cap:
            return int(cap)
    except Exception:
        pass
    return 64 * 1024 * 1024  # conservative fallback (v7x per-TensorCore)


def _budgets():
    cap = _vmem_capacity_bytes()
    # 7/8 of physical: ~112 MiB on v5e/v6e, ~56 MiB on v7x.
    vmem_limit = (cap * 7) // 8
    # Per-(C, ts) streamed block budget. Pass-2 footprint per step is roughly
    # 2x in + 2x out blocks (caller dtype) + 1 f32 dot-result block + misc,
    # so divide the limit by ~7 and keep a few MiB of headroom.
    block_budget = max(1 << 20, (vmem_limit - (4 << 20)) // 7)
    return vmem_limit, block_budget


# ------------------------------------------------------------------------- kernels

def _cse_fused_kernel(x_ref, o_ref):
    """Whole cSE for one batch element.  x_ref / o_ref: (C, S), caller dtype."""
    xt = x_ref[...]                                                       # (C, S)
    # energy = q @ q^T: contract the lane axis of both operands (no explicit
    # transpose materialized by us; Mosaic fuses it into the matmul for small C).
    energy = jax.lax.dot_general(xt, xt, (((1,), (1,)), ((), ())),
                                 preferred_element_type=jnp.float32)      # (C, C)
    # softmax(rowmax(E) - E) == softmax(-E); shift by rowmin(E) for stability.
    mn = jnp.min(energy, axis=-1, keepdims=True)
    p = jnp.exp(mn - energy)
    attn = p / jnp.sum(p, axis=-1, keepdims=True)                         # (C, C) f32
    # Cast the tiny (C, C) attn down to the stream dtype so the big matmul stays
    # at native (e.g. bf16) MXU rate; accumulation is still f32.
    o_ref[...] = jnp.dot(attn.astype(xt.dtype), xt,
                         preferred_element_type=jnp.float32).astype(o_ref.dtype)


def _cse_energy_partial_kernel(x_ref, part_ref, acc_ref, *, S, ts, n_s, mask_tail):
    """Pass 1: accumulate a partial (C, C) energy over this chunk's S tiles."""
    c = pl.program_id(1)
    s = pl.program_id(2)

    @pl.when(s == 0)
    def _():
        acc_ref[...] = jnp.zeros_like(acc_ref)

    xt = x_ref[...]                                                       # (C, ts)
    if mask_tail:
        # Ragged S: the last tile's out-of-bounds columns contain garbage
        # (Pallas does not zero them) -> mask before the energy matmul.
        start = (c * n_s + s) * ts
        col = jax.lax.broadcasted_iota(jnp.int32, xt.shape, 1)
        xt = jnp.where(col + start < S, xt, jnp.zeros_like(xt))
    acc_ref[...] += jax.lax.dot_general(xt, xt, (((1,), (1,)), ((), ())),
                                        preferred_element_type=jnp.float32)

    @pl.when(s == n_s - 1)
    def _():
        part_ref[...] = acc_ref[...]


def _cse_softmax_finalize_kernel(part_ref, attn_ref):
    """Sum chunk partials -> full energy -> row softmax(-E).  Tiny (C, C) work."""
    energy = jnp.sum(part_ref[...], axis=0)                               # (C, C) f32
    mn = jnp.min(energy, axis=-1, keepdims=True)
    p = jnp.exp(mn - energy)
    attn_ref[...] = (p / jnp.sum(p, axis=-1, keepdims=True)).astype(attn_ref.dtype)


def _cse_apply_kernel(attn_ref, x_ref, o_ref):
    """Pass 2: out tile = attn @ x tile (lane-dense store, partial tail clamped)."""
    o_ref[...] = jnp.dot(attn_ref[...], x_ref[...],
                         preferred_element_type=jnp.float32).astype(o_ref.dtype)


# ------------------------------------------------------------------------ wrappers

def _pick_spatial_tile(S, C, itemsize, block_budget_bytes):
    """Largest 128-multiple tile that fits the per-block byte budget (<= ceil128(S))."""
    by_budget = max(128, (block_budget_bytes // max(1, C * itemsize)) // 128 * 128)
    s_up = ((S + 127) // 128) * 128
    return min(s_up, by_budget)


def cse_attention_flat(x_flat, *, fused_budget_bytes=None, block_budget_bytes=None):
    """x_flat: (N, C, S) -> cSE output (N, C, S), same dtype as the input."""
    N, C, S = x_flat.shape
    itemsize = np.dtype(x_flat.dtype).itemsize
    out_dtype = x_flat.dtype
    attn_dtype = jnp.bfloat16 if x_flat.dtype == jnp.bfloat16 else jnp.float32

    vmem_limit, default_block = _budgets()
    block_budget = block_budget_bytes if block_budget_bytes is not None else default_block
    fused_budget = fused_budget_bytes if fused_budget_bytes is not None else vmem_limit

    # Fused-path admission: 2x in + 2x out double-buffered slabs (caller dtype)
    # + possible transposed-operand temp + f32 matmul-result temp + margin.
    slab_bytes = C * S * itemsize
    fused_cost = 5 * slab_bytes + C * S * 4 + (2 << 20)

    if fused_cost <= fused_budget:
        # Small/medium case: one fused kernel per batch element
        # (x read from HBM exactly once, out written exactly once).
        return pl.pallas_call(
            _cse_fused_kernel,
            out_shape=jax.ShapeDtypeStruct((N, C, S), out_dtype),
            grid=(N,),
            in_specs=[pl.BlockSpec((None, C, S), lambda n: (n, 0, 0))],
            out_specs=pl.BlockSpec((None, C, S), lambda n: (n, 0, 0)),
            compiler_params=pltpu.CompilerParams(
                dimension_semantics=("parallel",),
                vmem_limit_bytes=vmem_limit),
        )(x_flat)

    # Large case: stream lane-dense S tiles (no pad / slice HBM round trips).
    ts = _pick_spatial_tile(S, C, itemsize, block_budget)
    n_tiles = -(-S // ts)                       # cdiv
    mask_tail = (S % ts) != 0
    # Batch-1: split the S tiles into two "parallel" chunks so both v7x
    # TensorCores contribute to pass 1 (partial energies, summed in finalize).
    n_chunks = 2 if (N == 1 and n_tiles >= 2 and n_tiles % 2 == 0) else 1
    n_s = n_tiles // n_chunks

    part = pl.pallas_call(
        functools.partial(_cse_energy_partial_kernel,
                          S=S, ts=ts, n_s=n_s, mask_tail=mask_tail),
        out_shape=jax.ShapeDtypeStruct((N, n_chunks, C, C), jnp.float32),
        grid=(N, n_chunks, n_s),
        in_specs=[pl.BlockSpec((None, C, ts),
                               lambda n, c, s: (n, 0, c * n_s + s))],
        out_specs=pl.BlockSpec((None, None, C, C),
                               lambda n, c, s: (n, c, 0, 0)),
        scratch_shapes=[pltpu.VMEM((C, C), jnp.float32)],
        compiler_params=pltpu.CompilerParams(
            dimension_semantics=("parallel", "parallel", "arbitrary"),
            vmem_limit_bytes=vmem_limit),
    )(x_flat)

    attn = pl.pallas_call(
        _cse_softmax_finalize_kernel,
        out_shape=jax.ShapeDtypeStruct((N, C, C), attn_dtype),
        grid=(N,),
        in_specs=[pl.BlockSpec((None, n_chunks, C, C), lambda n: (n, 0, 0, 0))],
        out_specs=pl.BlockSpec((None, C, C), lambda n: (n, 0, 0)),
        compiler_params=pltpu.CompilerParams(
            dimension_semantics=("parallel",),
            vmem_limit_bytes=vmem_limit),
    )(part)

    out = pl.pallas_call(
        _cse_apply_kernel,
        out_shape=jax.ShapeDtypeStruct((N, C, S), out_dtype),
        grid=(N, n_tiles),
        in_specs=[pl.BlockSpec((None, C, C), lambda n, s: (n, 0, 0)),
                  pl.BlockSpec((None, C, ts), lambda n, s: (n, 0, s))],
        out_specs=pl.BlockSpec((None, C, ts), lambda n, s: (n, 0, s)),
        compiler_params=pltpu.CompilerParams(
            dimension_semantics=("parallel", "parallel"),
            vmem_limit_bytes=vmem_limit),
    )(attn, x_flat)

    return out


def cse_forward(x, **kwargs):
    """Pallas implementation of cSE.forward.  x: (N, C, H, W, D)."""
    N, C, H, W, D = x.shape
    out = cse_attention_flat(x.reshape(N, C, H * W * D), **kwargs)
    return out.reshape(N, C, H, W, D)


# --------------------------------------------------------------- pure-JAX reference

def cse_reference(x):
    N, C, H, W, D = x.shape
    q = x.reshape(N, C, -1).astype(jnp.float32)
    energy = jnp.einsum("ncs,nms->ncm", q, q)
    e_new = jnp.max(energy, axis=-1, keepdims=True) - energy
    attn = jax.nn.softmax(e_new, axis=-1)
    out = jnp.einsum("ncm,nms->ncs", attn, q)
    return out.reshape(N, C, H, W, D)


# ----------------------------------------------------------------------------- main

if __name__ == "__main__":
    key = jax.random.PRNGKey(0)
    k0, k1 = jax.random.split(key)

    # 1) Fused single-kernel path, f32 (slab fits the per-generation VMEM budget).
    x = jax.random.normal(k0, (2, 4, 8, 8, 8), jnp.float32)     # S = 512
    ref = cse_reference(x)
    out = jax.block_until_ready(cse_forward(x))
    assert out.shape == x.shape, out.shape
    np.testing.assert_allclose(np.asarray(out), np.asarray(ref), rtol=1e-3, atol=1e-3)

    # 2) Forced two-pass streaming path with ragged S (tail-tile masking + partial
    #    stores) and N == 1 (pass-1 chunk split across TensorCores).
    x_rag = jax.random.normal(k1, (1, 4, 5, 6, 7), jnp.float32)  # S = 210
    ref_rag = cse_reference(x_rag)
    out_rag = jax.block_until_ready(
        cse_forward(x_rag, fused_budget_bytes=0, block_budget_bytes=2048))
    np.testing.assert_allclose(np.asarray(out_rag), np.asarray(ref_rag),
                               rtol=1e-3, atol=1e-3)

    # 3) bf16 input: streams stay bf16 end-to-end (incl. bf16 attn in the two-pass
    #    path); accumulation is f32. Fused and forced-streaming variants.
    x_bf16 = x.astype(jnp.bfloat16)
    ref_bf16 = cse_reference(x_bf16.astype(jnp.float32))
    out_bf16 = jax.block_until_ready(cse_forward(x_bf16))
    np.testing.assert_allclose(np.asarray(out_bf16.astype(jnp.float32)),
                               np.asarray(ref_bf16), rtol=2e-2, atol=2e-2)
    out_bf16_s = jax.block_until_ready(
        cse_forward(x_bf16, fused_budget_bytes=0, block_budget_bytes=2048))
    np.testing.assert_allclose(np.asarray(out_bf16_s.astype(jnp.float32)),
                               np.asarray(ref_bf16), rtol=2e-2, atol=2e-2)

    print("KERNEL_OK")
</pallas_src>

<mosaic_0001>
module attributes {stable_mosaic.version = 11 : i64} {
  func.func @_cse_fused_kernel(%arg0: i32, %arg1: memref<1x4x512xf32, #tpu.memory_space<vmem>>, %arg2: memref<1x4x512xf32, #tpu.memory_space<vmem>>) attributes {dimension_semantics = [#tpu.dimension_semantics<parallel>], iteration_bounds = array<i64: 2>, scalar_prefetch = 0 : i64, scratch_operands = 0 : i64, tpu.core_type = #tpu.core_type<tc>, window_params = [{transform_indices = @transform_0, window_bounds = array<i64: 1, 4, 512>}, {transform_indices = @transform_1, window_bounds = array<i64: 1, 4, 512>}]} {
    %c0 = arith.constant 0 : index
    %c0_0 = arith.constant 0 : index
    %c0_1 = arith.constant 0 : index
    %0 = vector.load %arg1[%c0, %c0_0, %c0_1] : memref<1x4x512xf32, #tpu.memory_space<vmem>>, vector<1x4x512xf32>
    %1 = vector.shape_cast %0 : vector<1x4x512xf32> to vector<4x512xf32>
    %cst = arith.constant dense<0.000000e+00> : vector<4x4xf32>
    %2 = tpu.matmul %1, %1, %cst {dimension_numbers = #tpu.dot_dimension_numbers<[1], [1], [0], [0], [0, 0, 1, 0], [], []>} : vector<4x512xf32>, vector<4x512xf32>, vector<4x4xf32> -> vector<4x4xf32>
    %cst_2 = arith.constant dense<0x7F800000> : vector<4xf32>
    %3 = vector.multi_reduction <minimumf>, %2, %cst_2 [1] : vector<4x4xf32> to vector<4xf32>
    %4 = vector.shape_cast %3 : vector<4xf32> to vector<4x1xf32>
    %5 = vector.broadcast %4 : vector<4x1xf32> to vector<4x4xf32>
    %6 = arith.subf %5, %2 : vector<4x4xf32>
    %7 = math.exp %6 : vector<4x4xf32>
    %cst_3 = arith.constant dense<0.000000e+00> : vector<4xf32>
    %8 = vector.multi_reduction <add>, %7, %cst_3 [1] : vector<4x4xf32> to vector<4xf32>
    %9 = vector.shape_cast %8 : vector<4xf32> to vector<4x1xf32>
    %10 = vector.broadcast %9 : vector<4x1xf32> to vector<4x4xf32>
    %11 = arith.divf %7, %10 : vector<4x4xf32>
    %cst_4 = arith.constant dense<0.000000e+00> : vector<4x512xf32>
    %12 = tpu.matmul %11, %1, %cst_4 {dimension_numbers = #tpu.dot_dimension_numbers<[1], [0], [0], [1], [0, 0, 1, 1], [], []>} : vector<4x4xf32>, vector<4x512xf32>, vector<4x512xf32> -> vector<4x512xf32>
    %c0_5 = arith.constant 0 : index
    %c0_6 = arith.constant 0 : index
    %c0_7 = arith.constant 0 : index
    %13 = vector.load %arg2[%c0_5, %c0_6, %c0_7] : memref<1x4x512xf32, #tpu.memory_space<vmem>>, vector<1x4x512xf32>
    %14 = vector.shape_cast %13 : vector<1x4x512xf32> to vector<4x512xf32>
    %15 = vector.shape_cast %12 : vector<4x512xf32> to vector<1x4x512xf32>
    tpu.vector_store %arg2[%c0_5, %c0_6, %c0_7], %15 {strides = array<i32>} : memref<1x4x512xf32, #tpu.memory_space<vmem>>, vector<1x4x512xf32>,
    return
  }
  func.func @transform_0(%arg0: i32) -> (i32, i32, i32) {
    %c0_i32 = arith.constant 0 : i32
    %c0_i32_0 = arith.constant 0 : i32
    %c0_i32_1 = arith.constant 0 : i32
    return %arg0, %c0_i32, %c0_i32_0 : i32, i32, i32
  }
  func.func @transform_1(%arg0: i32) -> (i32, i32, i32) {
    %c0_i32 = arith.constant 0 : i32
    %c0_i32_0 = arith.constant 0 : i32
    %c0_i32_1 = arith.constant 0 : i32
    return %arg0, %c0_i32, %c0_i32_0 : i32, i32, i32
  }
}

</mosaic_0001>

<llo_original>
// kernel: tpu_custom_call.1
$region0: #{tpu_custom_call.1}
  #allocation0 [shape = 'u32[]', space=smem, size = 0x4, offset = 0x4, fixed_abs, tag = 'smem constant byte address 0x4 - core index']
  #allocation1 [shape = 'u32[144,128]{1,0:T(1,128)}', space=vmem, size = 0x12000, scoped, tag = 'internal scratch']
  %s0 = inlined_call_operand.hbm [shape: f32[2,4,512], index: 0, kind: input, shape index: {}]
  %s1 = inlined_call_operand.hbm [shape: f32[2,4,512], index: 1, kind: output, shape index: {}]
  %s2 = sld [smem:[#allocation0]]
  $region41: #{tpu_custom_call.1} parent=0
    _
  %s4 = ssub.s32 1, %s2
  %s5 = scalar_select 0, %s4, %s2
  $region1: #{tpu_custom_call.1} parent=0
    #allocation2 [shape = 'u8[16384]{0}', space=vmem, size = 0x4000, scoped, tag = 'input window, operand 0']
    #allocation3 [shape = 's32[2]{0}', space=sflag, size = 0x8, scoped, tag = 'scoped memory for tpu_custom_call.1']
    #allocation4 [shape = 's32[2]{0}', space=sflag, size = 0x8, scoped, tag = 'scoped memory for tpu_custom_call.1']
    #allocation5 [shape = 'u8[16384]{0}', space=vmem, size = 0x4000, scoped, tag = 'output window, operand 0']
    %6 = vsyncpa [#allocation3], 0
    %s7 = scalar_lea.sflag [#allocation3], 1
    %8 = vsyncpa %s7, 0
    %9 = vsyncpa [#allocation4], 0
    %s10 = scalar_lea.sflag [#allocation4], 1
    %11 = vsyncpa %s10, 0
    loop: start=0, step=1, limit=4
    $region2: #{tpu_custom_call.1} parent=1 // loop_pre_header
      _
    $region3: #{tpu_custom_call.1} parent=1 // loop_header
      %s13 = sphi 0, %s17
      %p14 = scmp.ge.s32.totalorder %s13, 4
      %s23 = sphi 0, %s25
      %s26 = sphi 0, %s23
      %s27 = sphi 0, %s26
      %s43 = sphi 0, %s27
      %s49 = sphi 0, %s51
      %s52 = sphi 0, %s49
      %s53 = sphi 0, %s52
      %s69 = sphi 0, %s53
    $region4: #{tpu_custom_call.1} parent=1 // loop_header_branch
      %16 = sbr.rel (%p14) target = $region8
    $region5: #{tpu_custom_call.1} parent=1 // loop_body
      %s18 = ssub.s32 %s13, 1
      %s19 = ssub.s32 %s13, 2
      %s20 = sadd.s32 %s13, 1
      %s21 = ssub.s32 %s13, %s20
      %p22 = scmp.eq.s32.totalorder %s21, 0
      %s24 = sadd.s32 %s23, 1
      %s25 = scalar_select %p22, %s23, %s24
      %p28 = pneg %p22
      %p29 = scmp.eq.s32.totalorder %s13, 1
      %p30 = por %p28, %p29
      %p31 = scmp.ne.s32.totalorder %s23, %s26
      %p32 = scmp.eq.s32.totalorder %s13, 0
      %p33 = por %p31, %p32
      %p34 = scmp.ne.s32.totalorder %s23, %s26
      %p35 = scmp.eq.s32.totalorder %s18, 1
      %p36 = por %p34, %p35
      %p37 = scmp.ne.s32.totalorder %s26, %s27
      %p38 = scmp.eq.s32.totalorder %s18, 0
      %p39 = por %p37, %p38
      %p40 = scmp.ne.s32.totalorder %s26, %s27
      %p41 = scmp.eq.s32.totalorder %s19, 1
      %p42 = por %p40, %p41
      %p44 = scmp.ne.s32.totalorder %s27, %s43
      %p45 = scmp.eq.s32.totalorder %s19, 0
      %p46 = por %p44, %p45
      %s47 = ssub.s32 %s13, %s20
      %p48 = scmp.eq.s32.totalorder %s47, 0
      %s50 = sadd.s32 %s49, 1
      %s51 = scalar_select %p48, %s49, %s50
      %p54 = pneg %p48
      %p55 = scmp.eq.s32.totalorder %s13, 1
      %p56 = por %p54, %p55
      %p57 = scmp.ne.s32.totalorder %s49, %s52
      %p58 = scmp.eq.s32.totalorder %s13, 0
      %p59 = por %p57, %p58
      %p60 = scmp.ne.s32.totalorder %s49, %s52
      %p61 = scmp.eq.s32.totalorder %s18, 1
      %p62 = por %p60, %p61
      %p63 = scmp.ne.s32.totalorder %s52, %s53
      %p64 = scmp.eq.s32.totalorder %s18, 0
      %p65 = por %p63, %p64
      %p66 = scmp.ne.s32.totalorder %s52, %s53
      %p67 = scmp.eq.s32.totalorder %s19, 1
      %p68 = por %p66, %p67
      %p70 = scmp.ne.s32.totalorder %s53, %s69
      %p71 = scmp.eq.s32.totalorder %s19, 0
      %p72 = por %p70, %p71
      %p73 = scmp.le.s32.totalorder 1, %s13
      %p74 = scmp.lt.s32.totalorder %s13, 3
      %p75 = pnand %p73, %p74
      %p76 = pneg %p75
      // Predicated region
      $region9: #{tpu_custom_call.1} parent=5 // pred_check
        _
      $region10: #{tpu_custom_call.1} parent=5 // pred_check_branch
        %78 = sbr.rel (%p75) target = $region12
      $region11: #{tpu_custom_call.1} parent=5 // pred_region
        %s79 = ssub.s32 %s13, 1
      $region12: #{tpu_custom_call.1} parent=5 // pred_fallthru
        _
      %p80 = scmp.lt.s32.totalorder %s13, 2
      // Predicated region
      $region13: #{tpu_custom_call.1} parent=5 // pred_check
        %p81 = pneg %p80
      $region14: #{tpu_custom_call.1} parent=5 // pred_check_branch
        %83 = sbr.rel (%p81) target = $region16
      $region15: #{tpu_custom_call.1} parent=5 // pred_region
        // Predicated region
        $region17: #{tpu_custom_call.1} parent=15 // pred_check
          %p84 = pneg %p33
        $region18: #{tpu_custom_call.1} parent=15 // pred_check_branch
          %86 = sbr.rel (%p84) target = $region20
        $region19: #{tpu_custom_call.1} parent=15 // pred_region
          %s87 = sand.u32 %s23, 1
          %s88 = scalar_lea.sflag [#allocation3], %s87
          %s89 = sand.u32 %s23, 1
          %s90 = smul.addr %s89, 16
          %s91 = scalar_lea.vmem [#allocation2], %s90
          %s93 = ssub.s32 256, 256
          %94 = vsyncadd %s88, %s93
          %s95 = smul.addr %s13, 4
          %s96 = smul.addr %s95, 64
          %s97 = scalar_lea.hbm %s0, %s96
          %s99 = sshll.u32 %s91, 4
          %s100 = int_to_ptr.vmem [resolvable:$true] %s99
          %102 = dma.hbm_to_vmem [thread:$0]  %s97, 256, %s100, %s88
        $region20: #{tpu_custom_call.1} parent=15 // pred_fallthru
          _
      $region16: #{tpu_custom_call.1} parent=5 // pred_fallthru
        _
      %p103 = scmp.le.s32.totalorder 1, %s13
      %p104 = scmp.lt.s32.totalorder %s13, 3
      %p105 = pnand %p103, %p104
      %p106 = pneg %p105
      // Predicated region
      $region21: #{tpu_custom_call.1} parent=5 // pred_check
        _
      $region22: #{tpu_custom_call.1} parent=5 // pred_check_branch
        %108 = sbr.rel (%p105) target = $region24
      $region23: #{tpu_custom_call.1} parent=5 // pred_region
        %s109 = ssub.s32 %s13, 1
        %s110 = sand.u32 %s26, 1
        %s111 = scalar_lea.sflag [#allocation3], %s110
        %s112 = sand.u32 %s26, 1
        %s113 = smul.addr %s112, 16
        %s114 = scalar_lea.vmem [#allocation2], %s113
        // Predicated region
        $region25: #{tpu_custom_call.1} parent=23 // pred_check
          %p115 = pneg %p39
        $region26: #{tpu_custom_call.1} parent=23 // pred_check_branch
          %117 = sbr.rel (%p115) target = $region28
        $region27: #{tpu_custom_call.1} parent=23 // pred_region
          %118 = dma.done %s111, 256
        $region28: #{tpu_custom_call.1} parent=23 // pred_fallthru
          _
        %s119 = sand.u32 %s26, 1
        %s120 = scalar_lea.sflag [#allocation3], %s119
        %s121 = sand.u32 %s26, 1
        %s122 = smul.addr %s121, 16
        %s123 = scalar_lea.vmem [#allocation2], %s122
        %p124 = pneg %p39
        %p125 = pneg %p36
        %p126 = pneg %p65
        %p127 = pneg %p62
        %s128 = sand.u32 %s52, 1
        %s129 = scalar_lea.sflag [#allocation4], %s128
        %s130 = sand.u32 %s52, 1
        %s131 = smul.addr %s130, 16
        %s132 = scalar_lea.vmem [#allocation5], %s131
        %v133 = vld [vmem:[%s114] sm:$0xff]
        %v134 = vld [vmem:[%s114 + $0x8] sm:$0xff]
        %v137 = vcombine.high %v133, %v133
        %v138 = vcombine.high %v134, %v134
        %141 = vmatprep.subr.mxu0 0.0
        %142 = vmatpush1.xpose.msra.mxu0 0.0
        %143 = vmatprep.subr.mxu0 0.0
        %144 = vmatpush1.xpose.msra.mxu0 0.0
        %145 = vmatprep.subr.mxu0 0.0
        %146 = vmatpush1.xpose.msra.mxu0 0.0
        %147 = vmatprep.subr.mxu0 0.0
        %148 = vmatpush1.xpose.msra.mxu0 0.0
        %149 = vmatprep.subr.mxu0 0.0
        %150 = vmatpush1.xpose.msra.mxu0 0.0
        %151 = vmatprep.subr.mxu0 0.0
        %152 = vmatpush1.xpose.msra.mxu0 0.0
        %153 = vmatprep.subr.mxu0 0.0
        %154 = vmatpush1.xpose.msra.mxu0 0.0
        %155 = vmatprep.subr.mxu0 0.0
        %156 = vmatpush1.xpose.msra.mxu0 0.0
        %157 = vmatprep.subr.mxu0 0.0
        %158 = vmatpush1.xpose.msra.mxu0 0.0
        %159 = vmatprep.subr.mxu0 0.0
        %160 = vmatpush1.xpose.msra.mxu0 0.0
        %161 = vmatprep.subr.mxu0 0.0
        %162 = vmatpush1.xpose.msra.mxu0 0.0
        %163 = vmatprep.subr.mxu0 0.0
        %164 = vmatpush1.xpose.msra.mxu0 0.0
        %165 = vmatprep.subr.mxu0 0.0
        %166 = vmatpush1.xpose.msra.mxu0 0.0
        %167 = vmatprep.subr.mxu0 0.0
        %168 = vmatpush1.xpose.msra.mxu0 0.0
        %169 = vmatprep.subr.mxu0 0.0
        %170 = vmatpush1.xpose.msra.mxu0 0.0
        %171 = vmatprep.subr.mxu0 %v137
        %172 = vmatpush1.xpose.msra.mxu0 %v133
        %173 = vmatprep.subr.mxu0 0.0
        %174 = vmatpush2.xpose.msra.mxu0 0.0
        %175 = vmatprep.subr.mxu0 0.0
        %176 = vmatpush2.xpose.msra.mxu0 0.0
        %177 = vmatprep.subr.mxu0 0.0
        %178 = vmatpush2.xpose.msra.mxu0 0.0
        %179 = vmatprep.subr.mxu0 0.0
        %180 = vmatpush2.xpose.msra.mxu0 0.0
        %181 = vmatprep.subr.mxu0 0.0
        %182 = vmatpush2.xpose.msra.mxu0 0.0
        %183 = vmatprep.subr.mxu0 0.0
        %184 = vmatpush2.xpose.msra.mxu0 0.0
        %185 = vmatprep.subr.mxu0 0.0
        %186 = vmatpush2.xpose.msra.mxu0 0.0
        %187 = vmatprep.subr.mxu0 0.0
        %188 = vmatpush2.xpose.msra.mxu0 0.0
        %189 = vmatprep.subr.mxu0 0.0
        %190 = vmatpush2.xpose.msra.mxu0 0.0
        %191 = vmatprep.subr.mxu0 0.0
        %192 = vmatpush2.xpose.msra.mxu0 0.0
        %193 = vmatprep.subr.mxu0 0.0
        %194 = vmatpush2.xpose.msra.mxu0 0.0
        %195 = vmatprep.subr.mxu0 0.0
        %196 = vmatpush2.xpose.msra.mxu0 0.0
        %197 = vmatprep.subr.mxu0 0.0
        %198 = vmatpush2.xpose.msra.mxu0 0.0
        %199 = vmatprep.subr.mxu0 0.0
        %200 = vmatpush2.xpose.msra.mxu0 0.0
        %201 = vmatprep.subr.mxu0 0.0
        %202 = vmatpush2.xpose.msra.mxu0 0.0
        %203 = vmatprep.subr.mxu0 0.0
        %204 = vmatpush2.xpose.msra.mxu0 0.0
        %205 = vmatprep.mubr.f32.mxu0 %v137
        %206 = vmatmul.mubr.f32.gmra.mxu0 %v133
        %v207 = vpop.f32.mrf.mxu0
        %v208 = vadd.f32 0.0, %v207
        %v209 = vpop.f32.mrf.mxu0
        %210 = vdwg.mxu0
        %211 = vmatprep.subr.mxu0 0.0
        %212 = vmatpush1.xpose.msra.mxu0 0.0
        %213 = vmatprep.subr.mxu0 0.0
        %214 = vmatpush1.xpose.msra.mxu0 0.0
        %215 = vmatprep.subr.mxu0 0.0
        %216 = vmatpush1.xpose.msra.mxu0 0.0
        %217 = vmatprep.subr.mxu0 0.0
        %218 = vmatpush1.xpose.msra.mxu0 0.0
        %219 = vmatprep.subr.mxu0 0.0
        %220 = vmatpush1.xpose.msra.mxu0 0.0
        %221 = vmatprep.subr.mxu0 0.0
        %222 = vmatpush1.xpose.msra.mxu0 0.0
        %223 = vmatprep.subr.mxu0 0.0
        %224 = vmatpush1.xpose.msra.mxu0 0.0
        %225 = vmatprep.subr.mxu0 0.0
        %226 = vmatpush1.xpose.msra.mxu0 0.0
        %227 = vmatprep.subr.mxu0 0.0
        %228 = vmatpush1.xpose.msra.mxu0 0.0
        %229 = vmatprep.subr.mxu0 0.0
        %230 = vmatpush1.xpose.msra.mxu0 0.0
        %231 = vmatprep.subr.mxu0 0.0
        %232 = vmatpush1.xpose.msra.mxu0 0.0
        %233 = vmatprep.subr.mxu0 0.0
        %234 = vmatpush1.xpose.msra.mxu0 0.0
        %235 = vmatprep.subr.mxu0 0.0
        %236 = vmatpush1.xpose.msra.mxu0 0.0
        %237 = vmatprep.subr.mxu0 0.0
        %238 = vmatpush1.xpose.msra.mxu0 0.0
        %239 = vmatprep.subr.mxu0 0.0
        %240 = vmatpush1.xpose.msra.mxu0 0.0
        %241 = vmatprep.subr.mxu0 %v138
        %242 = vmatpush1.xpose.msra.mxu0 %v134
        %243 = vmatprep.subr.mxu0 0.0
        %244 = vmatpush2.xpose.msra.mxu0 0.0
        %245 = vmatprep.subr.mxu0 0.0
        %246 = vmatpush2.xpose.msra.mxu0 0.0
        %247 = vmatprep.subr.mxu0 0.0
        %248 = vmatpush2.xpose.msra.mxu0 0.0
        %249 = vmatprep.subr.mxu0 0.0
        %250 = vmatpush2.xpose.msra.mxu0 0.0
        %251 = vmatprep.subr.mxu0 0.0
        %252 = vmatpush2.xpose.msra.mxu0 0.0
        %253 = vmatprep.subr.mxu0 0.0
        %254 = vmatpush2.xpose.msra.mxu0 0.0
        %255 = vmatprep.subr.mxu0 0.0
        %256 = vmatpush2.xpose.msra.mxu0 0.0
        %257 = vmatprep.subr.mxu0 0.0
        %258 = vmatpush2.xpose.msra.mxu0 0.0
        %259 = vmatprep.subr.mxu0 0.0
        %260 = vmatpush2.xpose.msra.mxu0 0.0
        %261 = vmatprep.subr.mxu0 0.0
        %262 = vmatpush2.xpose.msra.mxu0 0.0
        %263 = vmatprep.subr.mxu0 0.0
        %264 = vmatpush2.xpose.msra.mxu0 0.0
        %265 = vmatprep.subr.mxu0 0.0
        %266 = vmatpush2.xpose.msra.mxu0 0.0
        %267 = vmatprep.subr.mxu0 0.0
        %268 = vmatpush2.xpose.msra.mxu0 0.0
        %269 = vmatprep.subr.mxu0 0.0
        %270 = vmatpush2.xpose.msra.mxu0 0.0
        %271 = vmatprep.subr.mxu0 0.0
        %272 = vmatpush2.xpose.msra.mxu0 0.0
        %273 = vmatprep.subr.mxu0 0.0
        %274 = vmatpush2.xpose.msra.mxu0 0.0
        %275 = vmatprep.mubr.f32.mxu0 %v138
        %276 = vmatmul.mubr.f32.gmra.mxu0 %v134
        %v277 = vpop.f32.mrf.mxu0
        %v278 = vadd.f32 %v208, %v277
        %v279 = vpop.f32.mrf.mxu0
        %280 = vdwg.mxu0
        %vm281 = vcmask 27648
        %v282 = vsel %vm281, %v278, inf
        %283 = vmin.xlane.f32.xlu0 %v282
        %v284 = vpop.xlane.xlu0 %283
        %v285 = vsub.f32 %v284, %v278
        %v286 = vmul.f32 %v285, 1.442695
        %v287 = vpow.pop %v286
        %v288 = vsel %vm281, %v287, 0.0
        %289 = vadd.xlane.f32.xlu0 %v288
        %v290 = vpop.xlane.xlu0 %289
        %v291 = vrcp.pop %v290
        %v292 = vmul.f32 %v287, %v291
        %vm293 = vcmask 31744
        %v295 = vsel %vm293, %v292, 0
        %vm297 = vcmask 1043456
        %v298 = vsel %vm297, %v133, 0
        %v300 = vsel %vm297, %v137, 0
        %v302 = vsel %vm297, %v134, 0
        %v304 = vsel %vm297, %v138, 0
        %306 = vmatprep.subr.mxu0 0.0
        %307 = vmatpush1.msra.mxu0 0.0
        %308 = vmatprep.subr.mxu0 0.0
        %309 = vmatpush1.msra.mxu0 0.0
        %310 = vmatprep.subr.mxu0 0.0
        %311 = vmatpush1.msra.mxu0 0.0
        %312 = vmatprep.subr.mxu0 0.0
        %313 = vmatpush1.msra.mxu0 0.0
        %314 = vmatprep.subr.mxu0 0.0
        %315 = vmatpush1.msra.mxu0 0.0
        %316 = vmatprep.subr.mxu0 0.0
        %317 = vmatpush1.msra.mxu0 0.0
        %318 = vmatprep.subr.mxu0 0.0
        %319 = vmatpush1.msra.mxu0 0.0
        %320 = vmatprep.subr.mxu0 0.0
        %321 = vmatpush1.msra.mxu0 0.0
        %322 = vmatprep.subr.mxu0 0.0
        %323 = vmatpush1.msra.mxu0 0.0
        %324 = vmatprep.subr.mxu0 0.0
        %325 = vmatpush1.msra.mxu0 0.0
        %326 = vmatprep.subr.mxu0 0.0
        %327 = vmatpush1.msra.mxu0 0.0
        %328 = vmatprep.subr.mxu0 0.0
        %329 = vmatpush1.msra.mxu0 0.0
        %330 = vmatprep.subr.mxu0 0.0
        %331 = vmatpush1.msra.mxu0 0.0
        %332 = vmatprep.subr.mxu0 0.0
        %333 = vmatpush1.msra.mxu0 0.0
        %334 = vmatprep.subr.mxu0 0.0
        %335 = vmatpush1.msra.mxu0 0.0
        %336 = vmatprep.subr.mxu0 %v300
        %337 = vmatpush1.msra.mxu0 %v298
        %338 = vmatprep.subr.mxu0 0.0
        %339 = vmatpush2.msra.mxu0 0.0
        %340 = vmatprep.subr.mxu0 0.0
        %341 = vmatpush2.msra.mxu0 0.0
        %342 = vmatprep.subr.mxu0 0.0
        %343 = vmatpush2.msra.mxu0 0.0
        %344 = vmatprep.subr.mxu0 0.0
        %345 = vmatpush2.msra.mxu0 0.0
        %346 = vmatprep.subr.mxu0 0.0
        %347 = vmatpush2.msra.mxu0 0.0
        %348 = vmatprep.subr.mxu0 0.0
        %349 = vmatpush2.msra.mxu0 0.0
        %350 = vmatprep.subr.mxu0 0.0
        %351 = vmatpush2.msra.mxu0 0.0
        %352 = vmatprep.subr.mxu0 0.0
        %353 = vmatpush2.msra.mxu0 0.0
        %354 = vmatprep.subr.mxu0 0.0
        %355 = vmatpush2.msra.mxu0 0.0
        %356 = vmatprep.subr.mxu0 0.0
        %357 = vmatpush2.msra.mxu0 0.0
        %358 = vmatprep.subr.mxu0 0.0
        %359 = vmatpush2.msra.mxu0 0.0
        %360 = vmatprep.subr.mxu0 0.0
        %361 = vmatpush2.msra.mxu0 0.0
        %362 = vmatprep.subr.mxu0 0.0
        %363 = vmatpush2.msra.mxu0 0.0
        %364 = vmatprep.subr.mxu0 0.0
        %365 = vmatpush2.msra.mxu0 0.0
        %366 = vmatprep.subr.mxu0 0.0
        %367 = vmatpush2.msra.mxu0 0.0
        %368 = vmatprep.subr.mxu0 0.0
        %369 = vmatpush2.msra.mxu0 0.0
        %370 = vmatprep.mubr.f32.mxu0 0.0
        %371 = vmatmul.mubr.f32.gmra.mxu0 %v295
        %v372 = vpop.f32.mrf.mxu0
        %v373 = vadd.f32 0.0, %v372
        %v374 = vpop.f32.mrf.mxu0
        %v375 = vadd.f32 0.0, %v374
        %376 = vdwg.mxu0
        %377 = vmatprep.subr.mxu0 0.0
        %378 = vmatpush1.msra.mxu0 0.0
        %379 = vmatprep.subr.mxu0 0.0
        %380 = vmatpush1.msra.mxu0 0.0
        %381 = vmatprep.subr.mxu0 0.0
        %382 = vmatpush1.msra.mxu0 0.0
        %383 = vmatprep.subr.mxu0 0.0
        %384 = vmatpush1.msra.mxu0 0.0
        %385 = vmatprep.subr.mxu0 0.0
        %386 = vmatpush1.msra.mxu0 0.0
        %387 = vmatprep.subr.mxu0 0.0
        %388 = vmatpush1.msra.mxu0 0.0
        %389 = vmatprep.subr.mxu0 0.0
        %390 = vmatpush1.msra.mxu0 0.0
        %391 = vmatprep.subr.mxu0 0.0
        %392 = vmatpush1.msra.mxu0 0.0
        %393 = vmatprep.subr.mxu0 0.0
        %394 = vmatpush1.msra.mxu0 0.0
        %395 = vmatprep.subr.mxu0 0.0
        %396 = vmatpush1.msra.mxu0 0.0
        %397 = vmatprep.subr.mxu0 0.0
        %398 = vmatpush1.msra.mxu0 0.0
        %399 = vmatprep.subr.mxu0 0.0
        %400 = vmatpush1.msra.mxu0 0.0
        %401 = vmatprep.subr.mxu0 0.0
        %402 = vmatpush1.msra.mxu0 0.0
        %403 = vmatprep.subr.mxu0 0.0
        %404 = vmatpush1.msra.mxu0 0.0
        %405 = vmatprep.subr.mxu0 0.0
        %406 = vmatpush1.msra.mxu0 0.0
        %407 = vmatprep.subr.mxu0 %v304
        %408 = vmatpush1.msra.mxu0 %v302
        %409 = vmatprep.subr.mxu0 0.0
        %410 = vmatpush2.msra.mxu0 0.0
        %411 = vmatprep.subr.mxu0 0.0
        %412 = vmatpush2.msra.mxu0 0.0
        %413 = vmatprep.subr.mxu0 0.0
        %414 = vmatpush2.msra.mxu0 0.0
        %415 = vmatprep.subr.mxu0 0.0
        %416 = vmatpush2.msra.mxu0 0.0
        %417 = vmatprep.subr.mxu0 0.0
        %418 = vmatpush2.msra.mxu0 0.0
        %419 = vmatprep.subr.mxu0 0.0
        %420 = vmatpush2.msra.mxu0 0.0
        %421 = vmatprep.subr.mxu0 0.0
        %422 = vmatpush2.msra.mxu0 0.0
        %423 = vmatprep.subr.mxu0 0.0
        %424 = vmatpush2.msra.mxu0 0.0
        %425 = vmatprep.subr.mxu0 0.0
        %426 = vmatpush2.msra.mxu0 0.0
        %427 = vmatprep.subr.mxu0 0.0
        %428 = vmatpush2.msra.mxu0 0.0
        %429 = vmatprep.subr.mxu0 0.0
        %430 = vmatpush2.msra.mxu0 0.0
        %431 = vmatprep.subr.mxu0 0.0
        %432 = vmatpush2.msra.mxu0 0.0
        %433 = vmatprep.subr.mxu0 0.0
        %434 = vmatpush2.msra.mxu0 0.0
        %435 = vmatprep.subr.mxu0 0.0
        %436 = vmatpush2.msra.mxu0 0.0
        %437 = vmatprep.subr.mxu0 0.0
        %438 = vmatpush2.msra.mxu0 0.0
        %439 = vmatprep.subr.mxu0 0.0
        %440 = vmatpush2.msra.mxu0 0.0
        %441 = vmatprep.mubr.f32.mxu0 0.0
        %442 = vmatmul.mubr.f32.gmra.mxu0 %v295
        %v443 = vpop.f32.mrf.mxu0
        %v444 = vadd.f32 0.0, %v443
        %v445 = vpop.f32.mrf.mxu0
        %v446 = vadd.f32 0.0, %v445
        %447 = vdwg.mxu0
        %v452 = vcombine.low %v373, %v375
        %v453 = vcombine.low %v444, %v446
        %456 = vst [vmem:[%s132] sm:$0xff] %v452
        %457 = vst [vmem:[%s132 + $0x8] sm:$0xff] %v453
        %s458 = sand.u32 %s52, 1
        %s459 = scalar_lea.sflag [#allocation4], %s458
        %s460 = sand.u32 %s52, 1
        %s461 = smul.addr %s460, 16
        %s462 = scalar_lea.vmem [#allocation5], %s461
        // Predicated region
        $region29: #{tpu_custom_call.1} parent=23 // pred_check
          %p463 = pneg %p62
        $region30: #{tpu_custom_call.1} parent=23 // pred_check_branch
          %465 = sbr.rel (%p463) target = $region32
        $region31: #{tpu_custom_call.1} parent=23 // pred_region
          %s467 = ssub.s32 256, 256
          %468 = vsyncadd %s459, %s467
          %s469 = smul.addr %s18, 4
          %s470 = smul.addr %s469, 64
          %s471 = scalar_lea.hbm %s1, %s470
          %s473 = sshll.u32 %s462, 4
          %s474 = int_to_ptr.vmem [resolvable:$true] %s473
          %476 = dma.vmem_to_hbm [thread:$0]  %s474, 256, %s471, %s459
        $region32: #{tpu_custom_call.1} parent=23 // pred_fallthru
          _
      $region24: #{tpu_custom_call.1} parent=5 // pred_fallthru
        _
      %p477 = scmp.le.s32.totalorder 2, %s13
      // Predicated region
      $region33: #{tpu_custom_call.1} parent=5 // pred_check
        %p478 = pneg %p477
      $region34: #{tpu_custom_call.1} parent=5 // pred_check_branch
        %480 = sbr.rel (%p478) target = $region36
      $region35: #{tpu_custom_call.1} parent=5 // pred_region
        %s481 = ssub.s32 %s13, 2
        // Predicated region
        $region37: #{tpu_custom_call.1} parent=35 // pred_check
          %p482 = pneg %p68
        $region38: #{tpu_custom_call.1} parent=35 // pred_check_branch
          %484 = sbr.rel (%p482) target = $region40
        $region39: #{tpu_custom_call.1} parent=35 // pred_region
          %s485 = sand.u32 %s53, 1
          %s486 = scalar_lea.sflag [#allocation4], %s485
          %s487 = sand.u32 %s53, 1
          %s488 = smul.addr %s487, 16
          %s489 = scalar_lea.vmem [#allocation5], %s488
          %490 = dma.done %s486, 256
        $region40: #{tpu_custom_call.1} parent=35 // pred_fallthru
          _
      $region36: #{tpu_custom_call.1} parent=5 // pred_fallthru
        _
    $region6: #{tpu_custom_call.1} parent=1 // loop_footer
      %s17 = sadd.s32 1, %s13
    $region7: #{tpu_custom_call.1} parent=1 // loop_footer_branch
      %12 = sbr.rel target = $region3
    $region8: #{tpu_custom_call.1} parent=1 // loop_exit
      _
    %491 = vsyncpa [#allocation3], 1
    %s492 = scalar_lea.sflag [#allocation3], 1
    %493 = vsyncpa %s492, 1
    %494 = vsyncpa [#allocation4], 1
    %s495 = scalar_lea.sflag [#allocation4], 1
    %496 = vsyncpa %s495, 1

</llo_original>
